<compile_context>
chip_gen: v5e
topology: v5e:2x2
jax: 0.10.0
libtpu: 0.0.40
codegen_flags: <defaults>
</compile_context>

<pallas_src>
import jax
import jax.numpy as jnp
import numpy as np
from jax import lax
from jax.experimental import pallas as pl
from jax.experimental.pallas import tpu as pltpu


# ----------------------------------------------------------------------------
# Config (small shapes consistent with the module's forward)
# ----------------------------------------------------------------------------
B = 2          # train_batch_size
LQ = 8         # query_len
LP = 16        # passage_len
H = 32         # bert_hidden_dim
E = 32         # entity_dim
NE = 8         # entities per graph
KNUM = 11      # kernal_num
VOCAB = 64     # stand-in vocab size

NW = B * LQ + B * LP        # 48 word rows through the shared projection
NENT = 2 * B * NE           # 32 entity rows through the shared projection
PAIRS = LQ * LP + NE * NE   # 192 lanes: word (q,p) pairs then entity (q,p) pairs
NPOOL = LQ + NE             # 16 pooled columns: word queries | entity queries

# Packed weight-slab column layout (rows 0..KNUM-1 duplicated into KNUM..2*KNUM-1)
COL_MU = 0                  # KNRM kernel centers
COL_INV = 1                 # 1 / (2*sigma^2), precomputed
COL_W01 = 2                 # 0.01 * [w_wrd (LQ cols) | w_ent (NE cols)]
COL_LOCAL = COL_W01 + NPOOL          # 18: local_model weights * mix_w[1]
COL_SCAL = COL_LOCAL + 1             # 19: row0 = mix_w[0], row1 = b_feat
WCOLS = COL_SCAL + 1                 # 20

# Standard KNRM kernel centers / widths + deterministic stand-in feature weights.
_MU = [1.0] + [0.9 - 0.2 * i for i in range(KNUM - 1)]
_SIGMA = [1e-3] + [0.1] * (KNUM - 1)
_W_FEAT = [0.05 * ((i % 7) + 1) for i in range(2 * KNUM)]
_B_FEAT = 0.0


# ----------------------------------------------------------------------------
# Fused kernel
# ----------------------------------------------------------------------------
def _fused_kernel(ids_ref, wtab_ref, ent_ref, gatw_ref, mat_ref, wslab_ref, o_ref):
    f32 = jnp.float32
    ws = wslab_ref[...]                                   # (2*KNUM, WCOLS)

    # ---- word path: embedding + encoder + proj_hidden folded into one table ----
    # TODO(synk): pred_model (pretrained BERT) is external; stand-in is an embedding
    #             table + one no-bias encoder matmul, folded with proj_hidden on host.
    iota_v = lax.broadcasted_iota(jnp.int32, (NW, VOCAB), 1)
    onehot = (iota_v == ids_ref[...]).astype(f32)                         # (48, 64)
    wrd = jnp.dot(onehot, wtab_ref[...], preferred_element_type=f32)      # (48, 32)

    # ---- entity path: GAT stand-in projection, both graphs in one matmul ----
    # TODO(synk): GBT (graph attention) definition not provided; stand-in is a single
    #             no-bias entity projection (entity_dim -> entity_dim).
    ent = jnp.dot(ent_ref[...], gatw_ref[...], preferred_element_type=f32)  # (32, 32)

    # ---- L2-normalize rows once (shared by all cosine similarities) ----
    def l2n(x):
        return x * lax.rsqrt(jnp.sum(x * x, axis=-1, keepdims=True) + 1e-10)
    wrd_n = l2n(wrd)          # rows: [qry b0 | qry b1 | psg b0 | psg b1]
    ent_n = l2n(ent)          # rows: [qry b0 | qry b1 | psg b0 | psg b1]

    # ---- cosine similarities: ONE matmul per path (cross-batch blocks discarded) ----
    qw, pw = wrd_n[0:B * LQ], wrd_n[B * LQ:NW]
    qe, pe = ent_n[0:B * NE], ent_n[B * NE:NENT]
    dn = (((1,), (1,)), ((), ()))                         # contract embedding dim: A @ B^T
    sim_w = lax.dot_general(qw, pw, dn, preferred_element_type=f32)       # (16, 32)
    sim_e = lax.dot_general(qe, pe, dn, preferred_element_type=f32)       # (16, 16)

    # ---- lane-dense KNRM kernel pooling ----
    # Flatten each batch's similarity pairs into a single 192-lane row:
    #   lanes [0,128) = word pairs q*LP+p, lanes [128,192) = entity pairs q*NE+p.
    def flat_row(b):
        w_blk = sim_w[b * LQ:(b + 1) * LQ, b * LP:(b + 1) * LP]           # (8, 16)
        e_blk = sim_e[b * NE:(b + 1) * NE, b * NE:(b + 1) * NE]           # (8, 8)
        pieces = [w_blk[q:q + 1, :] for q in range(LQ)]
        pieces += [e_blk[q:q + 1, :] for q in range(NE)]
        return jnp.concatenate(pieces, axis=1)                            # (1, 192)

    row0 = jnp.broadcast_to(flat_row(0), (2 * KNUM, PAIRS))
    row1 = jnp.broadcast_to(flat_row(1), (2 * KNUM, PAIRS))
    r_idx = lax.broadcasted_iota(jnp.int32, (2 * KNUM, 1), 0)
    slab_sim = jnp.where(r_idx < KNUM, row0, row1)                        # (22, 192)

    mu = ws[:, COL_MU:COL_MU + 1]                                         # (22, 1)
    inv2s2 = ws[:, COL_INV:COL_INV + 1]                                   # (22, 1)
    w01 = ws[:, COL_W01:COL_W01 + NPOOL]                                  # (22, 16)

    d = slab_sim - mu
    k_slab = jnp.exp(-(d * d) * inv2s2)                                   # (22, 192) one EUP slab

    # Sum over passage positions of each query with one MXU matmul against a
    # block-diagonal 0/1 selection matrix built in-registers from iota.
    c_idx = lax.broadcasted_iota(jnp.int32, (NPOOL, PAIRS), 0)
    l_idx = lax.broadcasted_iota(jnp.int32, (NPOOL, PAIRS), 1)
    lower = jnp.where(c_idx < LQ, c_idx * LP, LQ * LP + (c_idx - LQ) * NE)
    width = jnp.where(c_idx < LQ, LP, NE)
    sel_t = jnp.logical_and(l_idx >= lower, l_idx < lower + width).astype(f32)  # (16, 192)
    ksum = lax.dot_general(k_slab, sel_t, dn, preferred_element_type=f32)       # (22, 16)

    pooled = jnp.log(jnp.maximum(ksum, 1e-10))                            # (22, 16)
    weighted = pooled * w01                            # 0.01 log-scale + feature weights folded

    # Per-batch reduction of the (KNUM x 16) feature block: tiny indicator matmul.
    gr = lax.broadcasted_iota(jnp.int32, (B, 2 * KNUM), 1)
    gb = lax.broadcasted_iota(jnp.int32, (B, 2 * KNUM), 0)
    grp = jnp.logical_and(gr >= gb * KNUM, gr < (gb + 1) * KNUM).astype(f32)    # (2, 22)
    feat = jnp.dot(grp, weighted, preferred_element_type=f32)                   # (2, 16)
    b_feat = ws[1:2, COL_SCAL:COL_SCAL + 1]
    score1 = jnp.tanh(jnp.sum(feat, axis=-1, keepdims=True) + b_feat)           # (2, 1)

    # ---- local_model stand-in: per-query max-pool + learned mix (m1 pre-folded) ----
    # TODO(synk): local_model's definition is not in the source; pooling+linear stand-in.
    # TODO(synk): no masking of padded positions (inference masks are all-ones).
    mat = mat_ref[...]                                                    # (2, 128) lane-dense
    score2 = jnp.zeros((B, 1), f32)
    for q in range(LQ):
        mq = jnp.max(mat[:, q * LP:(q + 1) * LP], axis=-1, keepdims=True)  # (2, 1)
        score2 = score2 + mq * ws[q:q + 1, COL_LOCAL:COL_LOCAL + 1]

    # ---- final Linear(2,1,bias=False) mix; single lane-dense broadcast store ----
    m0 = ws[0:1, COL_SCAL:COL_SCAL + 1]
    score = score1 * m0 + score2                                           # (2, 1)
    o_ref[...] = jnp.broadcast_to(score, (B, 128))


# ----------------------------------------------------------------------------
# Parameters (weight chain folded + everything small packed into one slab)
# ----------------------------------------------------------------------------
def make_params(key):
    ks = jax.random.split(key, 6)
    scale = 0.05
    embed = jax.random.normal(ks[0], (VOCAB, H), jnp.float32) * scale
    enc_w = jax.random.normal(ks[1], (H, H), jnp.float32) * scale
    proj_w = jax.random.normal(ks[2], (H, E), jnp.float32) * scale     # proj_hidden (no bias)
    gat_w = jax.random.normal(ks[3], (E, E), jnp.float32) * scale      # GAT stand-in
    local_w = jax.random.normal(ks[4], (LQ, 1), jnp.float32) * scale   # local_model stand-in
    mix_w = jax.random.normal(ks[5], (2,), jnp.float32) * scale        # Linear(2,1,bias=False)

    # Constant-fold the word path: onehot @ (embed @ enc_w @ proj_w).
    word_table = jnp.dot(jnp.dot(embed, enc_w), proj_w)                # (VOCAB, E)

    # One lane-dense packed slab: KNRM constants + feature weights + local/mix weights.
    wslab = np.zeros((2 * KNUM, WCOLS), np.float32)
    mu = np.asarray(_MU, np.float32)
    inv2s2 = np.asarray([1.0 / (2.0 * s * s) for s in _SIGMA], np.float32)
    w_wrd = 0.01 * np.asarray(_W_FEAT[0::2], np.float32)
    w_ent = 0.01 * np.asarray(_W_FEAT[1::2], np.float32)
    for r0 in (0, KNUM):                                  # duplicate per batch row-group
        wslab[r0:r0 + KNUM, COL_MU] = mu
        wslab[r0:r0 + KNUM, COL_INV] = inv2s2
        wslab[r0:r0 + KNUM, COL_W01:COL_W01 + LQ] = w_wrd[:, None]
        wslab[r0:r0 + KNUM, COL_W01 + LQ:COL_W01 + NPOOL] = w_ent[:, None]
    wslab[0:LQ, COL_LOCAL] = np.asarray(local_w[:, 0] * mix_w[1])      # fold mix m1
    wslab[0, COL_SCAL] = float(mix_w[0])                               # mix m0
    wslab[1, COL_SCAL] = _B_FEAT

    return {"word_table": word_table, "gat_w": gat_w, "wslab": jnp.asarray(wslab)}


# ----------------------------------------------------------------------------
# Full forward pass (mirrors inference_model.forward) — one grid-less pallas_call.
# ----------------------------------------------------------------------------
@jax.jit
def inference_forward(params, inp_tensor_qry, msk_tensor_qry, seg_tensor_qry,
                      inp_tensor, msk_tensor, seg_tensor, inp_ent, inp_matrix):
    # msk/seg tensors are unused by the stand-in encoder (all-ones / all-zeros).
    del msk_tensor_qry, seg_tensor_qry, msk_tensor, seg_tensor

    # Tiny host-side layout glue (reshape/concat only).
    ids_all = jnp.concatenate(
        [inp_tensor_qry.reshape(B * LQ), inp_tensor.reshape(B * LP)], axis=0
    ).reshape(NW, 1).astype(jnp.int32)
    ent_flat = inp_ent.reshape(NENT, E)
    mat_flat = inp_matrix.reshape(B, LQ * LP).astype(jnp.float32)      # lane-dense (2, 128)

    vmem = pltpu.MemorySpace.VMEM
    out = pl.pallas_call(
        _fused_kernel,
        out_shape=jax.ShapeDtypeStruct((B, 128), jnp.float32),
        in_specs=[
            pl.BlockSpec(memory_space=vmem),   # ids_all      (NW, 1) int32
            pl.BlockSpec(memory_space=vmem),   # word_table   (VOCAB, E)  folded
            pl.BlockSpec(memory_space=vmem),   # ent_flat     (NENT, E)
            pl.BlockSpec(memory_space=vmem),   # gat_w        (E, E)
            pl.BlockSpec(memory_space=vmem),   # mat_flat     (B, LQ*LP)
            pl.BlockSpec(memory_space=vmem),   # wslab        (2*KNUM, WCOLS)
        ],
        out_specs=pl.BlockSpec(memory_space=vmem),
    )(ids_all, params["word_table"], ent_flat, params["gat_w"], mat_flat, params["wslab"])

    return out[:, 0]                           # score.squeeze() -> (B,)


# ----------------------------------------------------------------------------
if __name__ == "__main__":
    key = jax.random.PRNGKey(0)
    kp, k1, k2, k3, k4 = jax.random.split(key, 5)

    params = make_params(kp)

    inp_tensor_qry = jax.random.randint(k1, (B, LQ), 0, VOCAB, dtype=jnp.int32)
    msk_tensor_qry = jnp.ones((B, LQ), jnp.int32)
    seg_tensor_qry = jnp.zeros((B, LQ), jnp.int32)

    inp_tensor = jax.random.randint(k2, (B, LP), 0, VOCAB, dtype=jnp.int32)
    msk_tensor = jnp.ones((B, LP), jnp.int32)
    seg_tensor = jnp.zeros((B, LP), jnp.int32)

    inp_ent = jax.random.normal(k3, (2, B, NE, E), jnp.float32)
    inp_matrix = jax.random.normal(k4, (B, LQ, LP), jnp.float32)

    out = inference_forward(params, inp_tensor_qry, msk_tensor_qry, seg_tensor_qry,
                            inp_tensor, msk_tensor, seg_tensor, inp_ent, inp_matrix)
    out = jax.block_until_ready(out)
    assert out.shape == (B,), out.shape
    print("KERNEL_OK")
</pallas_src>

<mosaic_0001>
module attributes {stable_mosaic.version = 11 : i64} {
  func.func @_fused_kernel(%arg0: memref<48x1xi32, #tpu.memory_space<vmem>>, %arg1: memref<64x32xf32, #tpu.memory_space<vmem>>, %arg2: memref<32x32xf32, #tpu.memory_space<vmem>>, %arg3: memref<32x32xf32, #tpu.memory_space<vmem>>, %arg4: memref<2x128xf32, #tpu.memory_space<vmem>>, %arg5: memref<22x20xf32, #tpu.memory_space<vmem>>, %arg6: memref<2x128xf32, #tpu.memory_space<vmem>>) attributes {dimension_semantics = [], scalar_prefetch = 0 : i64, scratch_operands = 0 : i64, tpu.core_type = #tpu.core_type<tc>} {
    %c0 = arith.constant 0 : index
    %c0_0 = arith.constant 0 : index
    %0 = vector.load %arg5[%c0, %c0_0] : memref<22x20xf32, #tpu.memory_space<vmem>>, vector<22x20xf32>
    %1 = tpu.iota {dimensions = array<i32: 1>} : vector<48x64xi32>
    %c0_1 = arith.constant 0 : index
    %c0_2 = arith.constant 0 : index
    %2 = vector.load %arg0[%c0_1, %c0_2] : memref<48x1xi32, #tpu.memory_space<vmem>>, vector<48x1xi32>
    %3 = vector.broadcast %2 : vector<48x1xi32> to vector<48x64xi32>
    %4 = arith.cmpi eq, %1, %3 : vector<48x64xi32>
    %5 = arith.extui %4 : vector<48x64xi1> to vector<48x64xi32>
    %6 = arith.sitofp %5 : vector<48x64xi32> to vector<48x64xf32>
    %c0_3 = arith.constant 0 : index
    %c0_4 = arith.constant 0 : index
    %7 = vector.load %arg1[%c0_3, %c0_4] : memref<64x32xf32, #tpu.memory_space<vmem>>, vector<64x32xf32>
    %cst = arith.constant dense<0.000000e+00> : vector<48x32xf32>
    %8 = tpu.matmul %6, %7, %cst {dimension_numbers = #tpu.dot_dimension_numbers<[1], [0], [0], [1], [0, 0, 1, 1], [], []>} : vector<48x64xf32>, vector<64x32xf32>, vector<48x32xf32> -> vector<48x32xf32>
    %c0_5 = arith.constant 0 : index
    %c0_6 = arith.constant 0 : index
    %9 = vector.load %arg2[%c0_5, %c0_6] : memref<32x32xf32, #tpu.memory_space<vmem>>, vector<32x32xf32>
    %c0_7 = arith.constant 0 : index
    %c0_8 = arith.constant 0 : index
    %10 = vector.load %arg3[%c0_7, %c0_8] : memref<32x32xf32, #tpu.memory_space<vmem>>, vector<32x32xf32>
    %cst_9 = arith.constant dense<0.000000e+00> : vector<32x32xf32>
    %11 = tpu.matmul %9, %10, %cst_9 {dimension_numbers = #tpu.dot_dimension_numbers<[1], [0], [0], [1], [0, 0, 1, 1], [], []>} : vector<32x32xf32>, vector<32x32xf32>, vector<32x32xf32> -> vector<32x32xf32>
    %12 = arith.mulf %8, %8 : vector<48x32xf32>
    %cst_10 = arith.constant dense<0.000000e+00> : vector<48xf32>
    %13 = vector.multi_reduction <add>, %12, %cst_10 [1] : vector<48x32xf32> to vector<48xf32>
    %14 = vector.shape_cast %13 : vector<48xf32> to vector<48x1xf32>
    %cst_11 = arith.constant 1.000000e-10 : f32
    %15 = vector.broadcast %cst_11 : f32 to vector<48x1xf32>
    %16 = arith.addf %14, %15 : vector<48x1xf32>
    %17 = math.rsqrt %16 : vector<48x1xf32>
    %18 = vector.broadcast %17 : vector<48x1xf32> to vector<48x32xf32>
    %19 = arith.mulf %8, %18 : vector<48x32xf32>
    %20 = arith.mulf %11, %11 : vector<32x32xf32>
    %cst_12 = arith.constant dense<0.000000e+00> : vector<32xf32>
    %21 = vector.multi_reduction <add>, %20, %cst_12 [1] : vector<32x32xf32> to vector<32xf32>
    %22 = vector.shape_cast %21 : vector<32xf32> to vector<32x1xf32>
    %cst_13 = arith.constant 1.000000e-10 : f32
    %23 = vector.broadcast %cst_13 : f32 to vector<32x1xf32>
    %24 = arith.addf %22, %23 : vector<32x1xf32>
    %25 = math.rsqrt %24 : vector<32x1xf32>
    %26 = vector.broadcast %25 : vector<32x1xf32> to vector<32x32xf32>
    %27 = arith.mulf %11, %26 : vector<32x32xf32>
    %28 = vector.extract_strided_slice %19 {offsets = [0, 0], sizes = [16, 32], strides = [1, 1]} : vector<48x32xf32> to vector<16x32xf32>
    %29 = vector.extract_strided_slice %19 {offsets = [16, 0], sizes = [32, 32], strides = [1, 1]} : vector<48x32xf32> to vector<32x32xf32>
    %30 = vector.extract_strided_slice %27 {offsets = [0, 0], sizes = [16, 32], strides = [1, 1]} : vector<32x32xf32> to vector<16x32xf32>
    %31 = vector.extract_strided_slice %27 {offsets = [16, 0], sizes = [16, 32], strides = [1, 1]} : vector<32x32xf32> to vector<16x32xf32>
    %cst_14 = arith.constant dense<0.000000e+00> : vector<16x32xf32>
    %32 = tpu.matmul %28, %29, %cst_14 {dimension_numbers = #tpu.dot_dimension_numbers<[1], [1], [0], [0], [0, 0, 1, 0], [], []>} : vector<16x32xf32>, vector<32x32xf32>, vector<16x32xf32> -> vector<16x32xf32>
    %cst_15 = arith.constant dense<0.000000e+00> : vector<16x16xf32>
    %33 = tpu.matmul %30, %31, %cst_15 {dimension_numbers = #tpu.dot_dimension_numbers<[1], [1], [0], [0], [0, 0, 1, 0], [], []>} : vector<16x32xf32>, vector<16x32xf32>, vector<16x16xf32> -> vector<16x16xf32>
    %34 = vector.extract_strided_slice %32 {offsets = [0, 0], sizes = [8, 16], strides = [1, 1]} : vector<16x32xf32> to vector<8x16xf32>
    %35 = vector.extract_strided_slice %33 {offsets = [0, 0], sizes = [8, 8], strides = [1, 1]} : vector<16x16xf32> to vector<8x8xf32>
    %36 = vector.extract_strided_slice %34 {offsets = [0, 0], sizes = [1, 16], strides = [1, 1]} : vector<8x16xf32> to vector<1x16xf32>
    %37 = vector.extract_strided_slice %34 {offsets = [1, 0], sizes = [1, 16], strides = [1, 1]} : vector<8x16xf32> to vector<1x16xf32>
    %38 = vector.extract_strided_slice %34 {offsets = [2, 0], sizes = [1, 16], strides = [1, 1]} : vector<8x16xf32> to vector<1x16xf32>
    %39 = vector.extract_strided_slice %34 {offsets = [3, 0], sizes = [1, 16], strides = [1, 1]} : vector<8x16xf32> to vector<1x16xf32>
    %40 = vector.extract_strided_slice %34 {offsets = [4, 0], sizes = [1, 16], strides = [1, 1]} : vector<8x16xf32> to vector<1x16xf32>
    %41 = vector.extract_strided_slice %34 {offsets = [5, 0], sizes = [1, 16], strides = [1, 1]} : vector<8x16xf32> to vector<1x16xf32>
    %42 = vector.extract_strided_slice %34 {offsets = [6, 0], sizes = [1, 16], strides = [1, 1]} : vector<8x16xf32> to vector<1x16xf32>
    %43 = vector.extract_strided_slice %34 {offsets = [7, 0], sizes = [1, 16], strides = [1, 1]} : vector<8x16xf32> to vector<1x16xf32>
    %44 = vector.extract_strided_slice %35 {offsets = [0, 0], sizes = [1, 8], strides = [1, 1]} : vector<8x8xf32> to vector<1x8xf32>
    %45 = vector.extract_strided_slice %35 {offsets = [1, 0], sizes = [1, 8], strides = [1, 1]} : vector<8x8xf32> to vector<1x8xf32>
    %46 = vector.extract_strided_slice %35 {offsets = [2, 0], sizes = [1, 8], strides = [1, 1]} : vector<8x8xf32> to vector<1x8xf32>
    %47 = vector.extract_strided_slice %35 {offsets = [3, 0], sizes = [1, 8], strides = [1, 1]} : vector<8x8xf32> to vector<1x8xf32>
    %48 = vector.extract_strided_slice %35 {offsets = [4, 0], sizes = [1, 8], strides = [1, 1]} : vector<8x8xf32> to vector<1x8xf32>
    %49 = vector.extract_strided_slice %35 {offsets = [5, 0], sizes = [1, 8], strides = [1, 1]} : vector<8x8xf32> to vector<1x8xf32>
    %50 = vector.extract_strided_slice %35 {offsets = [6, 0], sizes = [1, 8], strides = [1, 1]} : vector<8x8xf32> to vector<1x8xf32>
    %51 = vector.extract_strided_slice %35 {offsets = [7, 0], sizes = [1, 8], strides = [1, 1]} : vector<8x8xf32> to vector<1x8xf32>
    %52 = tpu.concatenate %36, %37, %38, %39, %40, %41, %42, %43, %44, %45, %46, %47, %48, %49, %50, %51 in 1 : vector<1x16xf32>, vector<1x16xf32>, vector<1x16xf32>, vector<1x16xf32>, vector<1x16xf32>, vector<1x16xf32>, vector<1x16xf32>, vector<1x16xf32>, vector<1x8xf32>, vector<1x8xf32>, vector<1x8xf32>, vector<1x8xf32>, vector<1x8xf32>, vector<1x8xf32>, vector<1x8xf32>, vector<1x8xf32> -> vector<1x192xf32>
    %53 = vector.shape_cast %52 : vector<1x192xf32> to vector<1x192xf32>
    %54 = vector.broadcast %53 : vector<1x192xf32> to vector<22x192xf32>
    %55 = vector.extract_strided_slice %32 {offsets = [8, 16], sizes = [8, 16], strides = [1, 1]} : vector<16x32xf32> to vector<8x16xf32>
    %56 = vector.extract_strided_slice %33 {offsets = [8, 8], sizes = [8, 8], strides = [1, 1]} : vector<16x16xf32> to vector<8x8xf32>
    %57 = vector.extract_strided_slice %55 {offsets = [0, 0], sizes = [1, 16], strides = [1, 1]} : vector<8x16xf32> to vector<1x16xf32>
    %58 = vector.extract_strided_slice %55 {offsets = [1, 0], sizes = [1, 16], strides = [1, 1]} : vector<8x16xf32> to vector<1x16xf32>
    %59 = vector.extract_strided_slice %55 {offsets = [2, 0], sizes = [1, 16], strides = [1, 1]} : vector<8x16xf32> to vector<1x16xf32>
    %60 = vector.extract_strided_slice %55 {offsets = [3, 0], sizes = [1, 16], strides = [1, 1]} : vector<8x16xf32> to vector<1x16xf32>
    %61 = vector.extract_strided_slice %55 {offsets = [4, 0], sizes = [1, 16], strides = [1, 1]} : vector<8x16xf32> to vector<1x16xf32>
    %62 = vector.extract_strided_slice %55 {offsets = [5, 0], sizes = [1, 16], strides = [1, 1]} : vector<8x16xf32> to vector<1x16xf32>
    %63 = vector.extract_strided_slice %55 {offsets = [6, 0], sizes = [1, 16], strides = [1, 1]} : vector<8x16xf32> to vector<1x16xf32>
    %64 = vector.extract_strided_slice %55 {offsets = [7, 0], sizes = [1, 16], strides = [1, 1]} : vector<8x16xf32> to vector<1x16xf32>
    %65 = vector.extract_strided_slice %56 {offsets = [0, 0], sizes = [1, 8], strides = [1, 1]} : vector<8x8xf32> to vector<1x8xf32>
    %66 = vector.extract_strided_slice %56 {offsets = [1, 0], sizes = [1, 8], strides = [1, 1]} : vector<8x8xf32> to vector<1x8xf32>
    %67 = vector.extract_strided_slice %56 {offsets = [2, 0], sizes = [1, 8], strides = [1, 1]} : vector<8x8xf32> to vector<1x8xf32>
    %68 = vector.extract_strided_slice %56 {offsets = [3, 0], sizes = [1, 8], strides = [1, 1]} : vector<8x8xf32> to vector<1x8xf32>
    %69 = vector.extract_strided_slice %56 {offsets = [4, 0], sizes = [1, 8], strides = [1, 1]} : vector<8x8xf32> to vector<1x8xf32>
    %70 = vector.extract_strided_slice %56 {offsets = [5, 0], sizes = [1, 8], strides = [1, 1]} : vector<8x8xf32> to vector<1x8xf32>
    %71 = vector.extract_strided_slice %56 {offsets = [6, 0], sizes = [1, 8], strides = [1, 1]} : vector<8x8xf32> to vector<1x8xf32>
    %72 = vector.extract_strided_slice %56 {offsets = [7, 0], sizes = [1, 8], strides = [1, 1]} : vector<8x8xf32> to vector<1x8xf32>
    %73 = tpu.concatenate %57, %58, %59, %60, %61, %62, %63, %64, %65, %66, %67, %68, %69, %70, %71, %72 in 1 : vector<1x16xf32>, vector<1x16xf32>, vector<1x16xf32>, vector<1x16xf32>, vector<1x16xf32>, vector<1x16xf32>, vector<1x16xf32>, vector<1x16xf32>, vector<1x8xf32>, vector<1x8xf32>, vector<1x8xf32>, vector<1x8xf32>, vector<1x8xf32>, vector<1x8xf32>, vector<1x8xf32>, vector<1x8xf32> -> vector<1x192xf32>
    %74 = vector.shape_cast %73 : vector<1x192xf32> to vector<1x192xf32>
    %75 = vector.broadcast %74 : vector<1x192xf32> to vector<22x192xf32>
    %76 = tpu.iota {dimensions = array<i32: 0>} : vector<22x1xi32>
    %c11_i32 = arith.constant 11 : i32
    %77 = vector.broadcast %c11_i32 : i32 to vector<22x1xi32>
    %78 = arith.cmpi slt, %76, %77 : vector<22x1xi32>
    %79 = vector.shape_cast %78 : vector<22x1xi1> to vector<22x1xi1>
    %80 = vector.broadcast %79 : vector<22x1xi1> to vector<22x192xi1>
    %81 = arith.select %80, %54, %75 : vector<22x192xi1>, vector<22x192xf32>
    %82 = vector.extract_strided_slice %0 {offsets = [0, 0], sizes = [22, 1], strides = [1, 1]} : vector<22x20xf32> to vector<22x1xf32>
    %83 = vector.extract_strided_slice %0 {offsets = [0, 1], sizes = [22, 1], strides = [1, 1]} : vector<22x20xf32> to vector<22x1xf32>
    %84 = vector.extract_strided_slice %0 {offsets = [0, 2], sizes = [22, 16], strides = [1, 1]} : vector<22x20xf32> to vector<22x16xf32>
    %85 = vector.broadcast %82 : vector<22x1xf32> to vector<22x192xf32>
    %86 = arith.subf %81, %85 : vector<22x192xf32>
    %87 = arith.mulf %86, %86 : vector<22x192xf32>
    %cst_16 = arith.constant 0.000000e+00 : f32
    %88 = vector.broadcast %cst_16 : f32 to vector<22x192xf32>
    %89 = arith.subf %88, %87 : vector<22x192xf32>
    %90 = vector.broadcast %83 : vector<22x1xf32> to vector<22x192xf32>
    %91 = arith.mulf %89, %90 : vector<22x192xf32>
    %92 = math.exp %91 : vector<22x192xf32>
    %93 = tpu.iota {dimensions = array<i32: 0>} : vector<16x192xi32>
    %94 = tpu.iota {dimensions = array<i32: 1>} : vector<16x192xi32>
    %c8_i32 = arith.constant 8 : i32
    %95 = vector.broadcast %c8_i32 : i32 to vector<16x192xi32>
    %96 = arith.cmpi slt, %93, %95 : vector<16x192xi32>
    %c16_i32 = arith.constant 16 : i32
    %97 = vector.broadcast %c16_i32 : i32 to vector<16x192xi32>
    %98 = arith.muli %93, %97 : vector<16x192xi32>
    %c8_i32_17 = arith.constant 8 : i32
    %99 = vector.broadcast %c8_i32_17 : i32 to vector<16x192xi32>
    %100 = arith.subi %93, %99 : vector<16x192xi32>
    %c8_i32_18 = arith.constant 8 : i32
    %101 = vector.broadcast %c8_i32_18 : i32 to vector<16x192xi32>
    %102 = arith.muli %100, %101 : vector<16x192xi32>
    %c128_i32 = arith.constant 128 : i32
    %103 = vector.broadcast %c128_i32 : i32 to vector<16x192xi32>
    %104 = arith.addi %103, %102 : vector<16x192xi32>
    %105 = arith.select %96, %98, %104 : vector<16x192xi1>, vector<16x192xi32>
    %c8_i32_19 = arith.constant 8 : i32
    %106 = vector.broadcast %c8_i32_19 : i32 to vector<16x192xi32>
    %107 = arith.cmpi slt, %93, %106 : vector<16x192xi32>
    %c16_i32_20 = arith.constant 16 : i32
    %c8_i32_21 = arith.constant 8 : i32
    %108 = vector.broadcast %c16_i32_20 : i32 to vector<16x192xi32>
    %109 = vector.broadcast %c8_i32_21 : i32 to vector<16x192xi32>
    %110 = arith.select %107, %108, %109 : vector<16x192xi1>, vector<16x192xi32>
    %111 = arith.cmpi sge, %94, %105 : vector<16x192xi32>
    %112 = arith.addi %105, %110 : vector<16x192xi32>
    %113 = arith.cmpi slt, %94, %112 : vector<16x192xi32>
    %114 = arith.andi %111, %113 : vector<16x192xi1>
    %115 = arith.extui %114 : vector<16x192xi1> to vector<16x192xi32>
    %116 = arith.sitofp %115 : vector<16x192xi32> to vector<16x192xf32>
    %cst_22 = arith.constant dense<0.000000e+00> : vector<22x16xf32>
    %117 = tpu.matmul %92, %116, %cst_22 {dimension_numbers = #tpu.dot_dimension_numbers<[1], [1], [0], [0], [0, 0, 1, 0], [], []>} : vector<22x192xf32>, vector<16x192xf32>, vector<22x16xf32> -> vector<22x16xf32>
    %cst_23 = arith.constant 1.000000e-10 : f32
    %118 = vector.broadcast %cst_23 : f32 to vector<22x16xf32>
    %119 = arith.maximumf %117, %118 : vector<22x16xf32>
    %120 = math.log %119 : vector<22x16xf32>
    %121 = arith.mulf %120, %84 : vector<22x16xf32>
    %122 = tpu.iota {dimensions = array<i32: 1>} : vector<2x22xi32>
    %123 = tpu.iota {dimensions = array<i32: 0>} : vector<2x22xi32>
    %c11_i32_24 = arith.constant 11 : i32
    %124 = vector.broadcast %c11_i32_24 : i32 to vector<2x22xi32>
    %125 = arith.muli %123, %124 : vector<2x22xi32>
    %126 = arith.cmpi sge, %122, %125 : vector<2x22xi32>
    %c1_i32 = arith.constant 1 : i32
    %127 = vector.broadcast %c1_i32 : i32 to vector<2x22xi32>
    %128 = arith.addi %123, %127 : vector<2x22xi32>
    %c11_i32_25 = arith.constant 11 : i32
    %129 = vector.broadcast %c11_i32_25 : i32 to vector<2x22xi32>
    %130 = arith.muli %128, %129 : vector<2x22xi32>
    %131 = arith.cmpi slt, %122, %130 : vector<2x22xi32>
    %132 = arith.andi %126, %131 : vector<2x22xi1>
    %133 = arith.extui %132 : vector<2x22xi1> to vector<2x22xi32>
    %134 = arith.sitofp %133 : vector<2x22xi32> to vector<2x22xf32>
    %cst_26 = arith.constant dense<0.000000e+00> : vector<2x16xf32>
    %135 = tpu.matmul %134, %121, %cst_26 {dimension_numbers = #tpu.dot_dimension_numbers<[1], [0], [0], [1], [0, 0, 1, 1], [], []>} : vector<2x22xf32>, vector<22x16xf32>, vector<2x16xf32> -> vector<2x16xf32>
    %136 = vector.extract_strided_slice %0 {offsets = [1, 19], sizes = [1, 1], strides = [1, 1]} : vector<22x20xf32> to vector<1x1xf32>
    %cst_27 = arith.constant dense<0.000000e+00> : vector<2xf32>
    %137 = vector.multi_reduction <add>, %135, %cst_27 [1] : vector<2x16xf32> to vector<2xf32>
    %138 = vector.shape_cast %137 : vector<2xf32> to vector<2x1xf32>
    %139 = vector.broadcast %136 : vector<1x1xf32> to vector<2x1xf32>
    %140 = arith.addf %138, %139 : vector<2x1xf32>
    %141 = math.tanh %140 : vector<2x1xf32>
    %c0_28 = arith.constant 0 : index
    %c0_29 = arith.constant 0 : index
    %142 = vector.load %arg4[%c0_28, %c0_29] : memref<2x128xf32, #tpu.memory_space<vmem>>, vector<2x128xf32>
    %cst_30 = arith.constant 0.000000e+00 : f32
    %143 = vector.broadcast %cst_30 : f32 to vector<2x1xf32>
    %144 = vector.extract_strided_slice %142 {offsets = [0, 0], sizes = [2, 16], strides = [1, 1]} : vector<2x128xf32> to vector<2x16xf32>
    %cst_31 = arith.constant dense<0xFF800000> : vector<2xf32>
    %145 = vector.multi_reduction <maximumf>, %144, %cst_31 [1] : vector<2x16xf32> to vector<2xf32>
    %146 = vector.shape_cast %145 : vector<2xf32> to vector<2x1xf32>
    %147 = vector.extract_strided_slice %0 {offsets = [0, 18], sizes = [1, 1], strides = [1, 1]} : vector<22x20xf32> to vector<1x1xf32>
    %148 = vector.broadcast %147 : vector<1x1xf32> to vector<2x1xf32>
    %149 = arith.mulf %146, %148 : vector<2x1xf32>
    %150 = arith.addf %143, %149 : vector<2x1xf32>
    %151 = vector.extract_strided_slice %142 {offsets = [0, 16], sizes = [2, 16], strides = [1, 1]} : vector<2x128xf32> to vector<2x16xf32>
    %cst_32 = arith.constant dense<0xFF800000> : vector<2xf32>
    %152 = vector.multi_reduction <maximumf>, %151, %cst_32 [1] : vector<2x16xf32> to vector<2xf32>
    %153 = vector.shape_cast %152 : vector<2xf32> to vector<2x1xf32>
    %154 = vector.extract_strided_slice %0 {offsets = [1, 18], sizes = [1, 1], strides = [1, 1]} : vector<22x20xf32> to vector<1x1xf32>
    %155 = vector.broadcast %154 : vector<1x1xf32> to vector<2x1xf32>
    %156 = arith.mulf %153, %155 : vector<2x1xf32>
    %157 = arith.addf %150, %156 : vector<2x1xf32>
    %158 = vector.extract_strided_slice %142 {offsets = [0, 32], sizes = [2, 16], strides = [1, 1]} : vector<2x128xf32> to vector<2x16xf32>
    %cst_33 = arith.constant dense<0xFF800000> : vector<2xf32>
    %159 = vector.multi_reduction <maximumf>, %158, %cst_33 [1] : vector<2x16xf32> to vector<2xf32>
    %160 = vector.shape_cast %159 : vector<2xf32> to vector<2x1xf32>
    %161 = vector.extract_strided_slice %0 {offsets = [2, 18], sizes = [1, 1], strides = [1, 1]} : vector<22x20xf32> to vector<1x1xf32>
    %162 = vector.broadcast %161 : vector<1x1xf32> to vector<2x1xf32>
    %163 = arith.mulf %160, %162 : vector<2x1xf32>
    %164 = arith.addf %157, %163 : vector<2x1xf32>
    %165 = vector.extract_strided_slice %142 {offsets = [0, 48], sizes = [2, 16], strides = [1, 1]} : vector<2x128xf32> to vector<2x16xf32>
    %cst_34 = arith.constant dense<0xFF800000> : vector<2xf32>
    %166 = vector.multi_reduction <maximumf>, %165, %cst_34 [1] : vector<2x16xf32> to vector<2xf32>
    %167 = vector.shape_cast %166 : vector<2xf32> to vector<2x1xf32>
    %168 = vector.extract_strided_slice %0 {offsets = [3, 18], sizes = [1, 1], strides = [1, 1]} : vector<22x20xf32> to vector<1x1xf32>
    %169 = vector.broadcast %168 : vector<1x1xf32> to vector<2x1xf32>
    %170 = arith.mulf %167, %169 : vector<2x1xf32>
    %171 = arith.addf %164, %170 : vector<2x1xf32>
    %172 = vector.extract_strided_slice %142 {offsets = [0, 64], sizes = [2, 16], strides = [1, 1]} : vector<2x128xf32> to vector<2x16xf32>
    %cst_35 = arith.constant dense<0xFF800000> : vector<2xf32>
    %173 = vector.multi_reduction <maximumf>, %172, %cst_35 [1] : vector<2x16xf32> to vector<2xf32>
    %174 = vector.shape_cast %173 : vector<2xf32> to vector<2x1xf32>
    %175 = vector.extract_strided_slice %0 {offsets = [4, 18], sizes = [1, 1], strides = [1, 1]} : vector<22x20xf32> to vector<1x1xf32>
    %176 = vector.broadcast %175 : vector<1x1xf32> to vector<2x1xf32>
    %177 = arith.mulf %174, %176 : vector<2x1xf32>
    %178 = arith.addf %171, %177 : vector<2x1xf32>
    %179 = vector.extract_strided_slice %142 {offsets = [0, 80], sizes = [2, 16], strides = [1, 1]} : vector<2x128xf32> to vector<2x16xf32>
    %cst_36 = arith.constant dense<0xFF800000> : vector<2xf32>
    %180 = vector.multi_reduction <maximumf>, %179, %cst_36 [1] : vector<2x16xf32> to vector<2xf32>
    %181 = vector.shape_cast %180 : vector<2xf32> to vector<2x1xf32>
    %182 = vector.extract_strided_slice %0 {offsets = [5, 18], sizes = [1, 1], strides = [1, 1]} : vector<22x20xf32> to vector<1x1xf32>
    %183 = vector.broadcast %182 : vector<1x1xf32> to vector<2x1xf32>
    %184 = arith.mulf %181, %183 : vector<2x1xf32>
    %185 = arith.addf %178, %184 : vector<2x1xf32>
    %186 = vector.extract_strided_slice %142 {offsets = [0, 96], sizes = [2, 16], strides = [1, 1]} : vector<2x128xf32> to vector<2x16xf32>
    %cst_37 = arith.constant dense<0xFF800000> : vector<2xf32>
    %187 = vector.multi_reduction <maximumf>, %186, %cst_37 [1] : vector<2x16xf32> to vector<2xf32>
    %188 = vector.shape_cast %187 : vector<2xf32> to vector<2x1xf32>
    %189 = vector.extract_strided_slice %0 {offsets = [6, 18], sizes = [1, 1], strides = [1, 1]} : vector<22x20xf32> to vector<1x1xf32>
    %190 = vector.broadcast %189 : vector<1x1xf32> to vector<2x1xf32>
    %191 = arith.mulf %188, %190 : vector<2x1xf32>
    %192 = arith.addf %185, %191 : vector<2x1xf32>
    %193 = vector.extract_strided_slice %142 {offsets = [0, 112], sizes = [2, 16], strides = [1, 1]} : vector<2x128xf32> to vector<2x16xf32>
    %cst_38 = arith.constant dense<0xFF800000> : vector<2xf32>
    %194 = vector.multi_reduction <maximumf>, %193, %cst_38 [1] : vector<2x16xf32> to vector<2xf32>
    %195 = vector.shape_cast %194 : vector<2xf32> to vector<2x1xf32>
    %196 = vector.extract_strided_slice %0 {offsets = [7, 18], sizes = [1, 1], strides = [1, 1]} : vector<22x20xf32> to vector<1x1xf32>
    %197 = vector.broadcast %196 : vector<1x1xf32> to vector<2x1xf32>
    %198 = arith.mulf %195, %197 : vector<2x1xf32>
    %199 = arith.addf %192, %198 : vector<2x1xf32>
    %200 = vector.extract_strided_slice %0 {offsets = [0, 19], sizes = [1, 1], strides = [1, 1]} : vector<22x20xf32> to vector<1x1xf32>
    %201 = vector.broadcast %200 : vector<1x1xf32> to vector<2x1xf32>
    %202 = arith.mulf %141, %201 : vector<2x1xf32>
    %203 = arith.addf %202, %199 : vector<2x1xf32>
    %204 = vector.shape_cast %203 : vector<2x1xf32> to vector<2x1xf32>
    %205 = vector.broadcast %204 : vector<2x1xf32> to vector<2x128xf32>
    %c0_39 = arith.constant 0 : index
    %c0_40 = arith.constant 0 : index
    %206 = vector.load %arg6[%c0_39, %c0_40] : memref<2x128xf32, #tpu.memory_space<vmem>>, vector<2x128xf32>
    tpu.vector_store %arg6[%c0_39, %c0_40], %205 {strides = array<i32>} : memref<2x128xf32, #tpu.memory_space<vmem>>, vector<2x128xf32>,
    return
  }
}

</mosaic_0001>

<llo_original>
// kernel: inference_forward.1
$region0: #{inference_forward.1}
  #allocation0 [shape = 'u32[]', space=smem, size = 0x4, offset = 0x4, fixed_abs, tag = 'smem constant byte address 0x4 - core index']
  #allocation1 [shape = 'u32[72,128]{1,0:T(1,128)}', space=vmem, size = 0x9000, scoped, tag = 'internal scratch']
  %s0 = inlined_call_operand.vmem [shape: s32[48,1], index: 0, kind: input, shape index: {}]
  %s1 = inlined_call_operand.vmem [shape: f32[64,32], index: 1, kind: input, shape index: {}]
  %s2 = inlined_call_operand.vmem [shape: f32[32,32], index: 2, kind: input, shape index: {}]
  %s3 = inlined_call_operand.vmem [shape: f32[32,32], index: 3, kind: input, shape index: {}]
  %s4 = inlined_call_operand.vmem [shape: f32[2,128], index: 4, kind: input, shape index: {}]
  %s5 = inlined_call_operand.vmem [shape: f32[22,20], index: 5, kind: input, shape index: {}]
  %s6 = inlined_call_operand.vmem [shape: f32[2,128], index: 6, kind: output, shape index: {}]
  %s7 = sld [smem:[#allocation0]]
  $region34: #{inference_forward.1} parent=0
    _
  %s9 = ssub.s32 1, %s7
  %s10 = scalar_select 0, %s9, %s7
  // Predicated region
  $region2: #{inference_forward.1} parent=0 // pred_check
    _
  $region3: #{inference_forward.1} parent=0 // pred_check_branch
    %12 = sbr.rel (0) target = $region5
  $region4: #{inference_forward.1} parent=0 // pred_region
    _
  $region5: #{inference_forward.1} parent=0 // pred_fallthru
    _
  // Predicated region
  $region6: #{inference_forward.1} parent=0 // pred_check
    _
  $region7: #{inference_forward.1} parent=0 // pred_check_branch
    %14 = sbr.rel (0) target = $region9
  $region8: #{inference_forward.1} parent=0 // pred_region
    _
  $region9: #{inference_forward.1} parent=0 // pred_fallthru
    _
  // Predicated region
  $region10: #{inference_forward.1} parent=0 // pred_check
    _
  $region11: #{inference_forward.1} parent=0 // pred_check_branch
    %16 = sbr.rel (0) target = $region13
  $region12: #{inference_forward.1} parent=0 // pred_region
    _
  $region13: #{inference_forward.1} parent=0 // pred_fallthru
    _
  // Predicated region
  $region14: #{inference_forward.1} parent=0 // pred_check
    _
  $region15: #{inference_forward.1} parent=0 // pred_check_branch
    %18 = sbr.rel (0) target = $region17
  $region16: #{inference_forward.1} parent=0 // pred_region
    _
  $region17: #{inference_forward.1} parent=0 // pred_fallthru
    _
  // Predicated region
  $region18: #{inference_forward.1} parent=0 // pred_check
    _
  $region19: #{inference_forward.1} parent=0 // pred_check_branch
    %20 = sbr.rel (0) target = $region21
  $region20: #{inference_forward.1} parent=0 // pred_region
    _
  $region21: #{inference_forward.1} parent=0 // pred_fallthru
    _
  // Predicated region
  $region22: #{inference_forward.1} parent=0 // pred_check
    _
  $region23: #{inference_forward.1} parent=0 // pred_check_branch
    %22 = sbr.rel (0) target = $region25
  $region24: #{inference_forward.1} parent=0 // pred_region
    _
  $region25: #{inference_forward.1} parent=0 // pred_fallthru
    _
  %v23 = vld [vmem:[%s5] sm:$0xff]
  %v24 = vld [vmem:[%s5 + $0x8] sm:$0xff]
  %v25 = vld [vmem:[%s5 + $0x10] sm:$0x3f]
  %v26 = vlaneseq
  %v27 = vand.u32 %v26, 127
  %v28 = vld [vmem:[%s0] sm:$0xff]
  %v29 = vld [vmem:[%s0 + $0x8] sm:$0xff]
  %v30 = vld [vmem:[%s0 + $0x10] sm:$0xff]
  %v31 = vld [vmem:[%s0 + $0x18] sm:$0xff]
  %v32 = vld [vmem:[%s0 + $0x20] sm:$0xff]
  %v33 = vld [vmem:[%s0 + $0x28] sm:$0xff]
  %34 = vset.pattern.permute.xlu0 0
  %35 = vperm.xlu0 %34, %v28
  %v36 = vpop.permute.xlu0 %35
  %37 = vset.pattern.permute.xlu0 0
  %38 = vperm.xlu0 %37, %v29
  %v39 = vpop.permute.xlu0 %38
  %40 = vset.pattern.permute.xlu0 0
  %41 = vperm.xlu0 %40, %v30
  %v42 = vpop.permute.xlu0 %41
  %43 = vset.pattern.permute.xlu0 0
  %44 = vperm.xlu0 %43, %v31
  %v45 = vpop.permute.xlu0 %44
  %46 = vset.pattern.permute.xlu0 0
  %47 = vperm.xlu0 %46, %v32
  %v48 = vpop.permute.xlu0 %47
  %49 = vset.pattern.permute.xlu0 0
  %50 = vperm.xlu0 %49, %v33
  %v51 = vpop.permute.xlu0 %50
  %vm52 = vcmp.eq.s32.totalorder %v27, %v36
  %vm53 = vcmp.eq.s32.totalorder %v27, %v39
  %vm54 = vcmp.eq.s32.totalorder %v27, %v42
  %vm55 = vcmp.eq.s32.totalorder %v27, %v45
  %vm56 = vcmp.eq.s32.totalorder %v27, %v48
  %vm57 = vcmp.eq.s32.totalorder %v27, %v51
  %v58 = vsel %vm52, 1, 0
  %v59 = vsel %vm53, 1, 0
  %v60 = vsel %vm54, 1, 0
  %v61 = vsel %vm55, 1, 0
  %v62 = vsel %vm56, 1, 0
  %v63 = vsel %vm57, 1, 0
  %v64 = vcvt.s32.f32 %v58
  %v65 = vcvt.s32.f32 %v59
  %v66 = vcvt.s32.f32 %v60
  %v67 = vcvt.s32.f32 %v61
  %v68 = vcvt.s32.f32 %v62
  %v69 = vcvt.s32.f32 %v63
  %v70 = vld [vmem:[%s1] sm:$0xff]
  %v71 = vld [vmem:[%s1 + $0x8] sm:$0xff]
  %v72 = vld [vmem:[%s1 + $0x10] sm:$0xff]
  %v73 = vld [vmem:[%s1 + $0x18] sm:$0xff]
  %v74 = vld [vmem:[%s1 + $0x20] sm:$0xff]
  %v75 = vld [vmem:[%s1 + $0x28] sm:$0xff]
  %v76 = vld [vmem:[%s1 + $0x30] sm:$0xff]
  %v77 = vld [vmem:[%s1 + $0x38] sm:$0xff]
  %vm78 = vcmask 523264
  %v80 = vsel %vm78, %v64, 0
  %v83 = vsel %vm78, %v65, 0
  %v86 = vsel %vm78, %v66, 0
  %v89 = vsel %vm78, %v67, 0
  %v92 = vsel %vm78, %v68, 0
  %v95 = vsel %vm78, %v69, 0
  %97 = vmatpush.msra.mxu0 0.0
  %98 = vmatpush.msra.mxu0 0.0
  %99 = vmatpush.msra.mxu0 0.0
  %100 = vmatpush.msra.mxu0 0.0
  %101 = vmatpush.msra.mxu0 0.0
  %102 = vmatpush.msra.mxu0 0.0
  %103 = vmatpush.msra.mxu0 0.0
  %104 = vmatpush.msra.mxu0 0.0
  %105 = vmatpush.msra.mxu0 %v77
  %106 = vmatpush.msra.mxu0 %v76
  %107 = vmatpush.msra.mxu0 %v75
  %108 = vmatpush.msra.mxu0 %v74
  %109 = vmatpush.msra.mxu0 %v73
  %110 = vmatpush.msra.mxu0 %v72
  %111 = vmatpush.msra.mxu0 %v71
  %112 = vmatpush.msra.mxu0 %v70
  %113 = vmatmul.f32.gmra.mxu0 %v80
  %v114 = vpop.f32.mrf.mxu0
  %v115 = vadd.f32 0.0, %v114
  %116 = vmatmul.f32.gmra.mxu0 %v83
  %v117 = vpop.f32.mrf.mxu0
  %v118 = vadd.f32 0.0, %v117
  %119 = vmatmul.f32.gmra.mxu0 %v86
  %v120 = vpop.f32.mrf.mxu0
  %v121 = vadd.f32 0.0, %v120
  %122 = vmatmul.f32.gmra.mxu0 %v89
  %v123 = vpop.f32.mrf.mxu0
  %v124 = vadd.f32 0.0, %v123
  %125 = vmatmul.f32.gmra.mxu0 %v92
  %v126 = vpop.f32.mrf.mxu0
  %v127 = vadd.f32 0.0, %v126
  %128 = vmatmul.f32.gmra.mxu0 %v95
  %v129 = vpop.f32.mrf.mxu0
  %v130 = vadd.f32 0.0, %v129
  %131 = vdwg.mxu0
  %v132 = vld [vmem:[%s2] sm:$0xff]
  %v133 = vld [vmem:[%s2 + $0x8] sm:$0xff]
  %v134 = vld [vmem:[%s2 + $0x10] sm:$0xff]
  %v135 = vld [vmem:[%s2 + $0x18] sm:$0xff]
  %v136 = vld [vmem:[%s3] sm:$0xff]
  %v137 = vld [vmem:[%s3 + $0x8] sm:$0xff]
  %v138 = vld [vmem:[%s3 + $0x10] sm:$0xff]
  %v139 = vld [vmem:[%s3 + $0x18] sm:$0xff]
  %vm140 = vcmask 261120
  %v142 = vsel %vm140, %v132, 0
  %v145 = vsel %vm140, %v133, 0
  %v148 = vsel %vm140, %v134, 0
  %v151 = vsel %vm140, %v135, 0
  %153 = vmatpush.msra.mxu0 0.0
  %154 = vmatpush.msra.mxu0 0.0
  %155 = vmatpush.msra.mxu0 0.0
  %156 = vmatpush.msra.mxu0 0.0
  %157 = vmatpush.msra.mxu0 0.0
  %158 = vmatpush.msra.mxu0 0.0
  %159 = vmatpush.msra.mxu0 0.0
  %160 = vmatpush.msra.mxu0 0.0
  %161 = vmatpush.msra.mxu0 0.0
  %162 = vmatpush.msra.mxu0 0.0
  %163 = vmatpush.msra.mxu0 0.0
  %164 = vmatpush.msra.mxu0 0.0
  %165 = vmatpush.msra.mxu0 %v139
  %166 = vmatpush.msra.mxu0 %v138
  %167 = vmatpush.msra.mxu0 %v137
  %168 = vmatpush.msra.mxu0 %v136
  %169 = vmatmul.f32.gmra.mxu0 %v142
  %v170 = vpop.f32.mrf.mxu0
  %v171 = vadd.f32 0.0, %v170
  %172 = vmatmul.f32.gmra.mxu0 %v145
  %v173 = vpop.f32.mrf.mxu0
  %v174 = vadd.f32 0.0, %v173
  %175 = vmatmul.f32.gmra.mxu0 %v148
  %v176 = vpop.f32.mrf.mxu0
  %v177 = vadd.f32 0.0, %v176
  %178 = vmatmul.f32.gmra.mxu0 %v151
  %v179 = vpop.f32.mrf.mxu0
  %v180 = vadd.f32 0.0, %v179
  %181 = vdwg.mxu0
  %v182 = vmul.f32 %v115, %v115
  %v183 = vmul.f32 %v118, %v118
  %v184 = vmul.f32 %v121, %v121
  %v185 = vmul.f32 %v124, %v124
  %v186 = vmul.f32 %v127, %v127
  %v187 = vmul.f32 %v130, %v130
  %v188 = vsel %vm140, %v182, 0.0
  %189 = vadd.xlane.f32.xlu0 %v188
  %v190 = vpop.xlane.xlu0 %189
  %v191 = vsel %vm140, %v183, 0.0
  %192 = vadd.xlane.f32.xlu0 %v191
  %v193 = vpop.xlane.xlu0 %192
  %v194 = vsel %vm140, %v184, 0.0
  %195 = vadd.xlane.f32.xlu0 %v194
  %v196 = vpop.xlane.xlu0 %195
  %v197 = vsel %vm140, %v185, 0.0
  %198 = vadd.xlane.f32.xlu0 %v197
  %v199 = vpop.xlane.xlu0 %198
  %v200 = vsel %vm140, %v186, 0.0
  %201 = vadd.xlane.f32.xlu0 %v200
  %v202 = vpop.xlane.xlu0 %201
  %v203 = vsel %vm140, %v187, 0.0
  %204 = vadd.xlane.f32.xlu0 %v203
  %v205 = vpop.xlane.xlu0 %204
  %v206 = vadd.f32 %v190, 1e-10
  %v207 = vadd.f32 %v193, 1e-10
  %v208 = vadd.f32 %v196, 1e-10
  %v209 = vadd.f32 %v199, 1e-10
  %v210 = vadd.f32 %v202, 1e-10
  %v211 = vadd.f32 %v205, 1e-10
  %v212 = vrsqrt.pop %v206
  %v213 = vmul.f32 %v212, %v206
  %v214 = vmul.f32 %v213, %v212
  %v215 = vmul.f32 0.5, %v214
  %v216 = vsub.f32 1.5, %v215
  %v217 = vmul.f32 %v212, %v216
  %vm218 = vweird.f32 %v206
  %vm219 = vweird.f32 %v212
  %vm220 = vmor %vm218, %vm219
  %v221 = vsel %vm220, %v212, %v217
  %v222 = vrsqrt.pop %v207
  %v223 = vmul.f32 %v222, %v207
  %v224 = vmul.f32 %v223, %v222
  %v225 = vmul.f32 0.5, %v224
  %v226 = vsub.f32 1.5, %v225
  %v227 = vmul.f32 %v222, %v226
  %vm228 = vweird.f32 %v207
  %vm229 = vweird.f32 %v222
  %vm230 = vmor %vm228, %vm229
  %v231 = vsel %vm230, %v222, %v227
  %v232 = vrsqrt.pop %v208
  %v233 = vmul.f32 %v232, %v208
  %v234 = vmul.f32 %v233, %v232
  %v235 = vmul.f32 0.5, %v234
  %v236 = vsub.f32 1.5, %v235
  %v237 = vmul.f32 %v232, %v236
  %vm238 = vweird.f32 %v208
  %vm239 = vweird.f32 %v232
  %vm240 = vmor %vm238, %vm239
  %v241 = vsel %vm240, %v232, %v237
  %v242 = vrsqrt.pop %v209
  %v243 = vmul.f32 %v242, %v209
  %v244 = vmul.f32 %v243, %v242
  %v245 = vmul.f32 0.5, %v244
  %v246 = vsub.f32 1.5, %v245
  %v247 = vmul.f32 %v242, %v246
  %vm248 = vweird.f32 %v209
  %vm249 = vweird.f32 %v242
  %vm250 = vmor %vm248, %vm249
  %v251 = vsel %vm250, %v242, %v247
  %v252 = vrsqrt.pop %v210
  %v253 = vmul.f32 %v252, %v210
  %v254 = vmul.f32 %v253, %v252
  %v255 = vmul.f32 0.5, %v254
  %v256 = vsub.f32 1.5, %v255
  %v257 = vmul.f32 %v252, %v256
  %vm258 = vweird.f32 %v210
  %vm259 = vweird.f32 %v252
  %vm260 = vmor %vm258, %vm259
  %v261 = vsel %vm260, %v252, %v257
  %v262 = vrsqrt.pop %v211
  %v263 = vmul.f32 %v262, %v211
  %v264 = vmul.f32 %v263, %v262
  %v265 = vmul.f32 0.5, %v264
  %v266 = vsub.f32 1.5, %v265
  %v267 = vmul.f32 %v262, %v266
  %vm268 = vweird.f32 %v211
  %vm269 = vweird.f32 %v262
  %vm270 = vmor %vm268, %vm269
  %v271 = vsel %vm270, %v262, %v267
  %v272 = vmul.f32 %v115, %v221
  %v273 = vmul.f32 %v118, %v231
  %v274 = vmul.f32 %v121, %v241
  %v275 = vmul.f32 %v124, %v251
  %v276 = vmul.f32 %v127, %v261
  %v277 = vmul.f32 %v130, %v271
  %v278 = vmul.f32 %v171, %v171
  %v279 = vmul.f32 %v174, %v174
  %v280 = vmul.f32 %v177, %v177
  %v281 = vmul.f32 %v180, %v180
  %v282 = vsel %vm140, %v278, 0.0
  %283 = vadd.xlane.f32.xlu0 %v282
  %v284 = vpop.xlane.xlu0 %283
  %v285 = vsel %vm140, %v279, 0.0
  %286 = vadd.xlane.f32.xlu0 %v285
  %v287 = vpop.xlane.xlu0 %286
  %v288 = vsel %vm140, %v280, 0.0
  %289 = vadd.xlane.f32.xlu0 %v288
  %v290 = vpop.xlane.xlu0 %289
  %v291 = vsel %vm140, %v281, 0.0
  %292 = vadd.xlane.f32.xlu0 %v291
  %v293 = vpop.xlane.xlu0 %292
  %v294 = vadd.f32 %v284, 1e-10
  %v295 = vadd.f32 %v287, 1e-10
  %v296 = vadd.f32 %v290, 1e-10
  %v297 = vadd.f32 %v293, 1e-10
  %v298 = vrsqrt.pop %v294
  %v299 = vmul.f32 %v298, %v294
  %v300 = vmul.f32 %v299, %v298
  %v301 = vmul.f32 0.5, %v300
  %v302 = vsub.f32 1.5, %v301
  %v303 = vmul.f32 %v298, %v302
  %vm304 = vweird.f32 %v294
  %vm305 = vweird.f32 %v298
  %vm306 = vmor %vm304, %vm305
  %v307 = vsel %vm306, %v298, %v303
  %v308 = vrsqrt.pop %v295
  %v309 = vmul.f32 %v308, %v295
  %v310 = vmul.f32 %v309, %v308
  %v311 = vmul.f32 0.5, %v310
  %v312 = vsub.f32 1.5, %v311
  %v313 = vmul.f32 %v308, %v312
  %vm314 = vweird.f32 %v295
  %vm315 = vweird.f32 %v308
  %vm316 = vmor %vm314, %vm315
  %v317 = vsel %vm316, %v308, %v313
  %v318 = vrsqrt.pop %v296
  %v319 = vmul.f32 %v318, %v296
  %v320 = vmul.f32 %v319, %v318
  %v321 = vmul.f32 0.5, %v320
  %v322 = vsub.f32 1.5, %v321
  %v323 = vmul.f32 %v318, %v322
  %vm324 = vweird.f32 %v296
  %vm325 = vweird.f32 %v318
  %vm326 = vmor %vm324, %vm325
  %v327 = vsel %vm326, %v318, %v323
  %v328 = vrsqrt.pop %v297
  %v329 = vmul.f32 %v328, %v297
  %v330 = vmul.f32 %v329, %v328
  %v331 = vmul.f32 0.5, %v330
  %v332 = vsub.f32 1.5, %v331
  %v333 = vmul.f32 %v328, %v332
  %vm334 = vweird.f32 %v297
  %vm335 = vweird.f32 %v328
  %vm336 = vmor %vm334, %vm335
  %v337 = vsel %vm336, %v328, %v333
  %v338 = vmul.f32 %v171, %v307
  %v339 = vmul.f32 %v174, %v317
  %v340 = vmul.f32 %v177, %v327
  %v341 = vmul.f32 %v180, %v337
  %v343 = vsel %vm140, %v272, 0
  %v346 = vsel %vm140, %v273, 0
  %v349 = vsel %vm140, %v274, 0
  %v352 = vsel %vm140, %v275, 0
  %v355 = vsel %vm140, %v276, 0
  %v358 = vsel %vm140, %v277, 0
  %360 = vmatpush.xpose.msra.mxu0 0.0
  %361 = vmatpush.xpose.msra.mxu0 0.0
  %362 = vmatpush.xpose.msra.mxu0 0.0
  %363 = vmatpush.xpose.msra.mxu0 0.0
  %364 = vmatpush.xpose.msra.mxu0 0.0
  %365 = vmatpush.xpose.msra.mxu0 0.0
  %366 = vmatpush.xpose.msra.mxu0 0.0
  %367 = vmatpush.xpose.msra.mxu0 0.0
  %368 = vmatpush.xpose.msra.mxu0 0.0
  %369 = vmatpush.xpose.msra.mxu0 0.0
  %370 = vmatpush.xpose.msra.mxu0 0.0
  %371 = vmatpush.xpose.msra.mxu0 0.0
  %372 = vmatpush.xpose.msra.mxu0 %v358
  %373 = vmatpush.xpose.msra.mxu0 %v355
  %374 = vmatpush.xpose.msra.mxu0 %v352
  %375 = vmatpush.xpose.msra.mxu0 %v349
  %376 = vmatmul.f32.gmra.mxu0 %v343
  %v377 = vpop.f32.mrf.mxu0
  %v378 = vadd.f32 0.0, %v377
  %379 = vmatmul.f32.gmra.mxu0 %v346
  %v380 = vpop.f32.mrf.mxu0
  %v381 = vadd.f32 0.0, %v380
  %382 = vdwg.mxu0
  %v384 = vsel %vm140, %v338, 0
  %v387 = vsel %vm140, %v339, 0
  %v390 = vsel %vm140, %v340, 0
  %v393 = vsel %vm140, %v341, 0
  %395 = vmatpush.xpose.msra.mxu0 0.0
  %396 = vmatpush.xpose.msra.mxu0 0.0
  %397 = vmatpush.xpose.msra.mxu0 0.0
  %398 = vmatpush.xpose.msra.mxu0 0.0
  %399 = vmatpush.xpose.msra.mxu0 0.0
  %400 = vmatpush.xpose.msra.mxu0 0.0
  %401 = vmatpush.xpose.msra.mxu0 0.0
  %402 = vmatpush.xpose.msra.mxu0 0.0
  %403 = vmatpush.xpose.msra.mxu0 0.0
  %404 = vmatpush.xpose.msra.mxu0 0.0
  %405 = vmatpush.xpose.msra.mxu0 0.0
  %406 = vmatpush.xpose.msra.mxu0 0.0
  %407 = vmatpush.xpose.msra.mxu0 0.0
  %408 = vmatpush.xpose.msra.mxu0 0.0
  %409 = vmatpush.xpose.msra.mxu0 %v393
  %410 = vmatpush.xpose.msra.mxu0 %v390
  %411 = vmatmul.f32.gmra.mxu0 %v384
  %v412 = vpop.f32.mrf.mxu0
  %v413 = vadd.f32 0.0, %v412
  %414 = vmatmul.f32.gmra.mxu0 %v387
  %v415 = vpop.f32.mrf.mxu0
  %v416 = vadd.f32 0.0, %v415
  %417 = vdwg.mxu0
  %v419 = vrot.slane %v378, 1
  %420 = vrot.lane.b32.xlu0 %v419, 16
  %v421 = vpop.permute.xlu0 %420
  %v423 = vrot.slane %v378, 2
  %424 = vrot.lane.b32.xlu0 %v423, 32
  %v425 = vpop.permute.xlu0 %424
  %v427 = vrot.slane %v378, 3
  %428 = vrot.lane.b32.xlu0 %v427, 48
  %v429 = vpop.permute.xlu0 %428
  %v431 = vrot.slane %v378, 4
  %432 = vrot.lane.b32.xlu0 %v431, 64
  %v433 = vpop.permute.xlu0 %432
  %v435 = vrot.slane %v378, 5
  %436 = vrot.lane.b32.xlu0 %v435, 80
  %v437 = vpop.permute.xlu0 %436
  %v439 = vrot.slane %v378, 6
  %440 = vrot.lane.b32.xlu0 %v439, 96
  %v441 = vpop.permute.xlu0 %440
  %v443 = vrot.slane %v378, 7
  %444 = vrot.lane.b32.xlu0 %v443, 112
  %v445 = vpop.permute.xlu0 %444
  %v448 = vrot.slane %v413, 1
  %449 = vrot.lane.b32.xlu0 %v448, 8
  %v450 = vpop.permute.xlu0 %449
  %v452 = vrot.slane %v413, 2
  %453 = vrot.lane.b32.xlu0 %v452, 16
  %v454 = vpop.permute.xlu0 %453
  %v456 = vrot.slane %v413, 3
  %457 = vrot.lane.b32.xlu0 %v456, 24
  %v458 = vpop.permute.xlu0 %457
  %v460 = vrot.slane %v413, 4
  %461 = vrot.lane.b32.xlu0 %v460, 32
  %v462 = vpop.permute.xlu0 %461
  %v464 = vrot.slane %v413, 5
  %465 = vrot.lane.b32.xlu0 %v464, 40
  %v466 = vpop.permute.xlu0 %465
  %v468 = vrot.slane %v413, 6
  %469 = vrot.lane.b32.xlu0 %v468, 48
  %v470 = vpop.permute.xlu0 %469
  %v472 = vrot.slane %v413, 7
  %473 = vrot.lane.b32.xlu0 %v472, 56
  %v474 = vpop.permute.xlu0 %473
  %vm476 = vcmask 130048
  %v477 = vsel %vm476, %v378, %v421
  %v478 = vsel %vm140, %v477, %v425
  %vm479 = vcmask 392192
  %v480 = vsel %vm479, %v478, %v429
  %v481 = vsel %vm78, %v480, %v433
  %vm482 = vcmask 654336
  %v483 = vsel %vm482, %v481, %v437
  %vm484 = vcmask 785408
  %v485 = vsel %vm484, %v483, %v441
  %vm486 = vcmask 916480
  %v487 = vsel %vm486, %v485, %v445
  %vm488 = vcmask 64512
  %v489 = vsel %vm488, %v413, %v450
  %v490 = vsel %vm476, %v489, %v454
  %vm491 = vcmask 195584
  %v492 = vsel %vm491, %v490, %v458
  %v493 = vsel %vm140, %v492, %v462
  %vm494 = vcmask 326656
  %v495 = vsel %vm494, %v493, %v466
  %v496 = vsel %vm479, %v495, %v470
  %vm497 = vcmask 457728
  %v498 = vsel %vm497, %v496, %v474
  %v499 = vperm.slane %v487, 0
  %v500 = vperm.slane %v498, 0
  %502 = vrot.lane.b32.xlu0 %v381, 112
  %v503 = vpop.permute.xlu0 %502
  %v505 = vrot.slane %v381, 1
  %v507 = vrot.slane %v381, 2
  %508 = vrot.lane.b32.xlu0 %v507, 16
  %v509 = vpop.permute.xlu0 %508
  %v511 = vrot.slane %v381, 3
  %512 = vrot.lane.b32.xlu0 %v511, 32
  %v513 = vpop.permute.xlu0 %512
  %v515 = vrot.slane %v381, 4
  %516 = vrot.lane.b32.xlu0 %v515, 48
  %v517 = vpop.permute.xlu0 %516
  %v519 = vrot.slane %v381, 5
  %520 = vrot.lane.b32.xlu0 %v519, 64
  %v521 = vpop.permute.xlu0 %520
  %v523 = vrot.slane %v381, 6
  %524 = vrot.lane.b32.xlu0 %v523, 80
  %v525 = vpop.permute.xlu0 %524
  %v527 = vrot.slane %v381, 7
  %528 = vrot.lane.b32.xlu0 %v527, 96
  %v529 = vpop.permute.xlu0 %528
  %532 = vrot.lane.b32.xlu0 %v416, 120
  %v533 = vpop.permute.xlu0 %532
  %v535 = vrot.slane %v416, 1
  %v537 = vrot.slane %v416, 2
  %538 = vrot.lane.b32.xlu0 %v537, 8
  %v539 = vpop.permute.xlu0 %538
  %v541 = vrot.slane %v416, 3
  %542 = vrot.lane.b32.xlu0 %v541, 16
  %v543 = vpop.permute.xlu0 %542
  %v545 = vrot.slane %v416, 4
  %546 = vrot.lane.b32.xlu0 %v545, 24
  %v547 = vpop.permute.xlu0 %546
  %v549 = vrot.slane %v416, 5
  %550 = vrot.lane.b32.xlu0 %v549, 32
  %v551 = vpop.permute.xlu0 %550
  %v553 = vrot.slane %v416, 6
  %554 = vrot.lane.b32.xlu0 %v553, 40
  %v555 = vpop.permute.xlu0 %554
  %v557 = vrot.slane %v416, 7
  %558 = vrot.lane.b32.xlu0 %v557, 48
  %v559 = vpop.permute.xlu0 %558
  %v561 = vsel %vm476, %v503, %v505
  %v562 = vsel %vm140, %v561, %v509
  %v563 = vsel %vm479, %v562, %v513
  %v564 = vsel %vm78, %v563, %v517
  %v565 = vsel %vm482, %v564, %v521
  %v566 = vsel %vm484, %v565, %v525
  %v567 = vsel %vm486, %v566, %v529
  %v568 = vsel %vm488, %v533, %v535
  %v569 = vsel %vm476, %v568, %v539
  %v570 = vsel %vm491, %v569, %v543
  %v571 = vsel %vm140, %v570, %v547
  %v572 = vsel %vm494, %v571, %v551
  %v573 = vsel %vm479, %v572, %v555
  %v574 = vsel %vm497, %v573, %v559
  %v575 = vperm.slane %v567, 0
  %v576 = vperm.slane %v574, 0
  %v577 = vlaneseq
  %v578 = vshrl.u32 %v577, 7
  %v579 = vadd.s32 %v578, 8
  %v580 = vadd.s32 %v578, 16
  %vm581 = vcmp.lt.s32.totalorder %v578, 11
  %vm582 = vcmp.lt.s32.totalorder %v579, 11
  %vm583 = vcmp.lt.s32.totalorder %v580, 11
  %v584 = vsel %vm581, 1, 0
  %v585 = vsel %vm582, 1, 0
  %v586 = vsel %vm583, 1, 0
  %vm587 = vcmp.eq.s32.totalorder %v584, 1
  %vm588 = vcmp.eq.s32.totalorder %v585, 1
  %vm589 = vcmp.eq.s32.totalorder %v586, 1
  %v590 = vsel %vm587, %v499, %v575
  %v591 = vsel %vm587, %v500, %v576
  %v592 = vsel %vm588, %v499, %v575
  %v593 = vsel %vm588, %v500, %v576
  %v594 = vsel %vm589, %v499, %v575
  %v595 = vsel %vm589, %v500, %v576
  %597 = vset.pattern.permute.xlu0 0
  %598 = vperm.xlu0 %597, %v23
  %v599 = vpop.permute.xlu0 %598
  %602 = vset.pattern.permute.xlu0 0
  %603 = vperm.xlu0 %602, %v24
  %v604 = vpop.permute.xlu0 %603
  %607 = vset.pattern.permute.xlu0 0
  %608 = vperm.xlu0 %607, %v25
  %v609 = vpop.permute.xlu0 %608
  %v611 = vsub.f32 %v590, %v599
  %v612 = vsub.f32 %v591, %v599
  %v613 = vsub.f32 %v592, %v604
  %v614 = vsub.f32 %v593, %v604
  %v615 = vsub.f32 %v594, %v609
  %v616 = vsub.f32 %v595, %v609
  %v617 = vmul.f32 %v611, %v611
  %v618 = vmul.f32 %v612, %v612
  %v619 = vmul.f32 %v613, %v613
  %v620 = vmul.f32 %v614, %v614
  %v621 = vmul.f32 %v615, %v615
  %v622 = vmul.f32 %v616, %v616
  %v623 = vsub.f32 0.0, %v617
  %v624 = vsub.f32 0.0, %v618
  %v625 = vsub.f32 0.0, %v619
  %v626 = vsub.f32 0.0, %v620
  %v627 = vsub.f32 0.0, %v621
  %v628 = vsub.f32 0.0, %v622
  %629 = vset.pattern.permute.xlu0 1
  %630 = vperm.xlu0 %629, %v23
  %v631 = vpop.permute.xlu0 %630
  %633 = vset.pattern.permute.xlu0 1
  %634 = vperm.xlu0 %633, %v24
  %v635 = vpop.permute.xlu0 %634
  %637 = vset.pattern.permute.xlu0 1
  %638 = vperm.xlu0 %637, %v25
  %v639 = vpop.permute.xlu0 %638
  %v641 = vmul.f32 %v623, %v631
  %v642 = vmul.f32 %v624, %v631
  %v643 = vmul.f32 %v625, %v635
  %v644 = vmul.f32 %v626, %v635
  %v645 = vmul.f32 %v627, %v639
  %v646 = vmul.f32 %v628, %v639
  %v647 = vmul.f32 %v641, 1.442695
  %v648 = vpow.pop %v647
  %v649 = vmul.f32 %v642, 1.442695
  %v650 = vpow.pop %v649
  %v651 = vmul.f32 %v643, 1.442695
  %v652 = vpow.pop %v651
  %v653 = vmul.f32 %v644, 1.442695
  %v654 = vpow.pop %v653
  %v655 = vmul.f32 %v645, 1.442695
  %v656 = vpow.pop %v655
  %v657 = vmul.f32 %v646, 1.442695
  %v658 = vpow.pop %v657
  %v659 = vadd.s32 %v27, 128
  %vm660 = vcmp.lt.s32.totalorder %v578, 8
  %vm661 = vcmp.lt.s32.totalorder %v579, 8
  %v662 = vmul.u32 %v578, 16
  %v663 = vmul.u32 %v579, 16
  %v664 = vsub.s32 %v578, 8
  %v665 = vmul.u32 %v664, 8
  %v666 = vmul.u32 %v578, 8
  %v667 = vadd.s32 %v665, 128
  %v668 = vadd.s32 %v666, 128
  %v669 = vsel %vm660, %v662, %v667
  %v670 = vsel %vm661, %v663, %v668
  %v671 = vsel %vm660, 16, 8
  %v672 = vsel %vm661, 16, 8
  %vm673 = vcmp.ge.s32.totalorder %v27, %v669
  %vm674 = vcmp.ge.s32.totalorder %v659, %v669
  %vm675 = vcmp.ge.s32.totalorder %v27, %v670
  %vm676 = vcmp.ge.s32.totalorder %v659, %v670
  %v677 = vadd.s32 %v669, %v671
  %v678 = vadd.s32 %v670, %v672
  %vm679 = vcmp.lt.s32.totalorder %v27, %v677
  %vm680 = vcmp.lt.s32.totalorder %v659, %v677
  %vm681 = vcmp.lt.s32.totalorder %v27, %v678
  %vm682 = vcmp.lt.s32.totalorder %v659, %v678
  %vm683 = vmand %vm673, %vm679
  %vm684 = vmand %vm674, %vm680
  %vm685 = vmand %vm675, %vm681
  %vm686 = vmand %vm676, %vm682
  %v687 = vsel %vm683, 1, 0
  %v688 = vsel %vm684, 1, 0
  %v689 = vsel %vm685, 1, 0
  %v690 = vsel %vm686, 1, 0
  %v691 = vcvt.s32.f32 %v687
  %v692 = vcvt.s32.f32 %v688
  %v693 = vcvt.s32.f32 %v689
  %v694 = vcvt.s32.f32 %v690
  %v696 = vsel %vm78, %v650, 0
  %v699 = vsel %vm78, %v654, 0
  %v702 = vsel %vm78, %v658, 0
  %v705 = vsel %vm78, %v692, 0
  %v708 = vsel %vm78, %v694, 0
  %710 = vmatpush.xpose.msra.mxu0 0.0
  %711 = vmatpush.xpose.msra.mxu0 0.0
  %712 = vmatpush.xpose.msra.mxu0 0.0
  %713 = vmatpush.xpose.msra.mxu0 0.0
  %714 = vmatpush.xpose.msra.mxu0 0.0
  %715 = vmatpush.xpose.msra.mxu0 0.0
  %716 = vmatpush.xpose.msra.mxu0 0.0
  %717 = vmatpush.xpose.msra.mxu0 0.0
  %718 = vmatpush.xpose.msra.mxu0 0.0
  %719 = vmatpush.xpose.msra.mxu0 0.0
  %720 = vmatpush.xpose.msra.mxu0 0.0
  %721 = vmatpush.xpose.msra.mxu0 0.0
  %722 = vmatpush.xpose.msra.mxu0 0.0
  %723 = vmatpush.xpose.msra.mxu0 0.0
  %724 = vmatpush.xpose.msra.mxu0 %v693
  %725 = vmatpush.xpose.msra.mxu0 %v691
  %726 = vmatmul.f32.gmra.mxu0 %v648
  %v727 = vpop.f32.mrf.mxu0
  %v728 = vadd.f32 0.0, %v727
  %729 = vmatmul.f32.gmra.mxu0 %v652
  %v730 = vpop.f32.mrf.mxu0
  %v731 = vadd.f32 0.0, %v730
  %732 = vmatmul.f32.gmra.mxu0 %v656
  %v733 = vpop.f32.mrf.mxu0
  %v734 = vadd.f32 0.0, %v733
  %735 = vdwg.mxu0
  %736 = vmatpush.xpose.msra.mxu0 0.0
  %737 = vmatpush.xpose.msra.mxu0 0.0
  %738 = vmatpush.xpose.msra.mxu0 0.0
  %739 = vmatpush.xpose.msra.mxu0 0.0
  %740 = vmatpush.xpose.msra.mxu0 0.0
  %741 = vmatpush.xpose.msra.mxu0 0.0
  %742 = vmatpush.xpose.msra.mxu0 0.0
  %743 = vmatpush.xpose.msra.mxu0 0.0
  %744 = vmatpush.xpose.msra.mxu0 0.0
  %745 = vmatpush.xpose.msra.mxu0 0.0
  %746 = vmatpush.xpose.msra.mxu0 0.0
  %747 = vmatpush.xpose.msra.mxu0 0.0
  %748 = vmatpush.xpose.msra.mxu0 0.0
  %749 = vmatpush.xpose.msra.mxu0 0.0
  %750 = vmatpush.xpose.msra.mxu0 %v708
  %751 = vmatpush.xpose.msra.mxu0 %v705
  %752 = vmatmul.f32.gmra.mxu0 %v696
  %v753 = vpop.f32.mrf.mxu0
  %v754 = vadd.f32 %v728, %v753
  %755 = vmatmul.f32.gmra.mxu0 %v699
  %v756 = vpop.f32.mrf.mxu0
  %v757 = vadd.f32 %v731, %v756
  %758 = vmatmul.f32.gmra.mxu0 %v702
  %v759 = vpop.f32.mrf.mxu0
  %v760 = vadd.f32 %v734, %v759
  %761 = vdwg.mxu0
  %v762 = vmax.f32 %v754, 1e-10
  %v763 = vmax.f32 %v757, 1e-10
  %v764 = vmax.f32 %v760, 1e-10
  %v765 = vlog2.pop %v762
  %v766 = vmul.f32 %v765, 0.6931472
  %v767 = vlog2.pop %v763
  %v768 = vmul.f32 %v767, 0.6931472
  %v769 = vlog2.pop %v764
  %v770 = vmul.f32 %v769, 0.6931472
  %771 = vrot.lane.b32.xlu0 %v23, 126
  %v772 = vpop.permute.xlu0 %771
  %773 = vrot.lane.b32.xlu0 %v24, 126
  %v774 = vpop.permute.xlu0 %773
  %775 = vrot.lane.b32.xlu0 %v25, 126
  %v776 = vpop.permute.xlu0 %775
  %v780 = vmul.f32 %v766, %v772
  %v781 = vmul.f32 %v768, %v774
  %v782 = vmul.f32 %v770, %v776
  %v783 = vmul.u32 %v578, 11
  %vm784 = vcmp.ge.s32.totalorder %v27, %v783
  %v785 = vadd.s32 %v578, 1
  %v786 = vmul.u32 %v785, 11
  %vm787 = vcmp.lt.s32.totalorder %v27, %v786
  %vm788 = vmand %vm784, %vm787
  %v789 = vsel %vm788, 1, 0
  %v790 = vcvt.s32.f32 %v789
  %vm791 = vcmask 179200
  %v793 = vsel %vm791, %v790, 0
  %vm795 = vcmask 1045504
  %v797 = vsel %vm795, %v782, 0
  %799 = vmatpush.msra.mxu0 0.0
  %800 = vmatpush.msra.mxu0 0.0
  %801 = vmatpush.msra.mxu0 0.0
  %802 = vmatpush.msra.mxu0 0.0
  %803 = vmatpush.msra.mxu0 0.0
  %804 = vmatpush.msra.mxu0 0.0
  %805 = vmatpush.msra.mxu0 0.0
  %806 = vmatpush.msra.mxu0 0.0
  %807 = vmatpush.msra.mxu0 0.0
  %808 = vmatpush.msra.mxu0 0.0
  %809 = vmatpush.msra.mxu0 0.0
  %810 = vmatpush.msra.mxu0 0.0
  %811 = vmatpush.msra.mxu0 0.0
  %812 = vmatpush.msra.mxu0 %v797
  %813 = vmatpush.msra.mxu0 %v781
  %814 = vmatpush.msra.mxu0 %v780
  %815 = vmatmul.f32.gmra.mxu0 %v793
  %v816 = vpop.f32.mrf.mxu0
  %v817 = vadd.f32 0.0, %v816
  %818 = vdwg.mxu0
  %vm819 = vcmask 123904
  %v820 = vsel %vm819, %v817, 0.0
  %821 = vadd.xlane.f32.xlu0 %v820
  %v822 = vpop.xlane.xlu0 %821
  %v823 = vperm.slane %v23, 1
  %v824 = vadd.f32 %v822, %v823
  %v825 = vtanh.pop %v824
  %v826 = vld [vmem:[%s4] sm:$0x3]
  %v827 = vsel %vm819, %v826, -inf
  %828 = vmax.xlane.f32.xlu0 %v827
  %v829 = vpop.xlane.xlu0 %828
  %v830 = vperm.slane %v23, 0
  %v831 = vmul.f32 %v829, %v830
  %v832 = vadd.f32 %v831, 0.0
  %vm833 = vcmask 255104
  %v834 = vsel %vm833, %v826, -inf
  %835 = vmax.xlane.f32.xlu0 %v834
  %v836 = vpop.xlane.xlu0 %835
  %v837 = vmul.f32 %v836, %v823
  %v838 = vadd.f32 %v832, %v837
  %vm839 = vcmask 386304
  %v840 = vsel %vm839, %v826, -inf
  %841 = vmax.xlane.f32.xlu0 %v840
  %v842 = vpop.xlane.xlu0 %841
  %v843 = vperm.slane %v23, 2
  %v844 = vmul.f32 %v842, %v843
  %v845 = vadd.f32 %v838, %v844
  %vm846 = vcmask 517504
  %v847 = vsel %vm846, %v826, -inf
  %848 = vmax.xlane.f32.xlu0 %v847
  %v849 = vpop.xlane.xlu0 %848
  %v850 = vperm.slane %v23, 3
  %v851 = vmul.f32 %v849, %v850
  %v852 = vadd.f32 %v845, %v851
  %vm853 = vcmask 648704
  %v854 = vsel %vm853, %v826, -inf
  %855 = vmax.xlane.f32.xlu0 %v854
  %v856 = vpop.xlane.xlu0 %855
  %v857 = vperm.slane %v23, 4
  %v858 = vmul.f32 %v856, %v857
  %v859 = vadd.f32 %v852, %v858
  %vm860 = vcmask 779904
  %v861 = vsel %vm860, %v826, -inf
  %862 = vmax.xlane.f32.xlu0 %v861
  %v863 = vpop.xlane.xlu0 %862
  %v864 = vperm.slane %v23, 5
  %v865 = vmul.f32 %v863, %v864
  %v866 = vadd.f32 %v859, %v865
  %vm867 = vcmask 911104
  %v868 = vsel %vm867, %v826, -inf
  %869 = vmax.xlane.f32.xlu0 %v868
  %v870 = vpop.xlane.xlu0 %869
  %v871 = vperm.slane %v23, 6
  %v872 = vmul.f32 %v870, %v871
  %v873 = vadd.f32 %v866, %v872
  %vm874 = vcmask 1042304
  %v875 = vsel %vm874, %v826, -inf
  %876 = vmax.xlane.f32.xlu0 %v875
  %v877 = vpop.xlane.xlu0 %876
  %v878 = vperm.slane %v23, 7
  %v879 = vmul.f32 %v877, %v878
  %v880 = vadd.f32 %v873, %v879
  %v881 = vmul.f32 %v825, %v830
  %883 = vrot.lane.b32.xlu0 %v880, 1
  %v884 = vpop.permute.xlu0 %883
  %v886 = vadd.f32 %v881, %v884
  %888 = vset.pattern.permute.xlu0 19
  %889 = vperm.xlu0 %888, %v886
  %v890 = vpop.permute.xlu0 %889
  %892 = vst [vmem:[%s6] sm:$0x3] %v890
  // Predicated region
  $region26: #{inference_forward.1} parent=0 // pred_check
    _
  $region27: #{inference_forward.1} parent=0 // pred_check_branch
    %894 = sbr.rel (0) target = $region29
  $region28: #{inference_forward.1} parent=0 // pred_region
    _
  $region29: #{inference_forward.1} parent=0 // pred_fallthru
    _
  // Predicated region
  $region30: #{inference_forward.1} parent=0 // pred_check
    _
  $region31: #{inference_forward.1} parent=0 // pred_check_branch
    %896 = sbr.rel (0) target = $region33
  $region32: #{inference_forward.1} parent=0 // pred_region
    _
  $region33: #{inference_forward.1} parent=0 // pred_fallthru
    _

</llo_original>
